<compile_context>
chip_gen: v7x
topology: tpu7x:2x2x1
jax: 0.10.0
libtpu: 0.0.40
codegen_flags: <defaults>
</compile_context>

<pallas_src>
import jax
import jax.numpy as jnp
from jax import lax
from jax.experimental import pallas as pl
from jax.experimental.pallas import tpu as pltpu

_LANE = 128


def _round_up(x, m):
    return (x + m - 1) // m * m


def _vmem_capacity_bytes():
    try:
        return int(pltpu.get_tpu_info().vmem_capacity_bytes)
    except Exception:
        return 64 * 1024 * 1024  # conservative default (v7x per-core VMEM)


def _input_block_spec(b, tile_d, n_buf):
    if n_buf == 2:
        return pl.BlockSpec((b, tile_d), lambda j: (0, j))
    try:
        return pl.BlockSpec((b, tile_d), lambda j: (0, j),
                            pipeline_mode=pl.Buffered(n_buf))
    except TypeError:  # BlockSpec without pipeline_mode: fall back to default depth
        return pl.BlockSpec((b, tile_d), lambda j: (0, j))


def _make_barlow_tile_kernel(chunk_b, n_full, tail, unroll):
    """Builds the per-feature-tile kernel.

    e_ref / tau_ref : (B, tile_d) block (full batch, one feature tile).
    out_ref         : (1, tile_d) per-feature squared error (1 - diag(c))**2.

    Two-pass, batch-chunked reduction so in-kernel f32 temporaries never exceed
    a few (chunk_b, tile_d) slabs (important on v7x's 64 MiB VMEM).
    """

    def kernel(e_ref, tau_ref, out_ref):
        b_total = e_ref.shape[0]
        t_width = e_ref.shape[1]
        inv_b = 1.0 / b_total

        def load(ref, off, rows):
            return ref[pl.ds(off, rows), :].astype(jnp.float32)

        zeros = jnp.zeros((1, t_width), jnp.float32)

        # ---- pass 1: per-feature sums over the batch (chunked) ----
        def sum_body(i, carry):
            se, st = carry
            off = i * chunk_b
            if chunk_b % 8 == 0:
                off = pl.multiple_of(off, 8)
            e = load(e_ref, off, chunk_b)
            t = load(tau_ref, off, chunk_b)
            return (se + jnp.sum(e, axis=0, keepdims=True),
                    st + jnp.sum(t, axis=0, keepdims=True))

        se, st = lax.fori_loop(0, n_full, sum_body, (zeros, zeros), unroll=unroll)
        if tail:
            e = e_ref[n_full * chunk_b:, :].astype(jnp.float32)
            t = tau_ref[n_full * chunk_b:, :].astype(jnp.float32)
            se = se + jnp.sum(e, axis=0, keepdims=True)
            st = st + jnp.sum(t, axis=0, keepdims=True)

        e_mean = se * inv_b
        t_mean = st * inv_b

        # ---- pass 2: centered sums of squares / cross-products (chunked) ----
        def cen_body(i, carry):
            ess, tss, cov = carry
            off = i * chunk_b
            if chunk_b % 8 == 0:
                off = pl.multiple_of(off, 8)
            de = load(e_ref, off, chunk_b) - e_mean
            dt = load(tau_ref, off, chunk_b) - t_mean
            return (ess + jnp.sum(de * de, axis=0, keepdims=True),
                    tss + jnp.sum(dt * dt, axis=0, keepdims=True),
                    cov + jnp.sum(de * dt, axis=0, keepdims=True))

        ess, tss, cov = lax.fori_loop(0, n_full, cen_body,
                                      (zeros, zeros, zeros), unroll=unroll)
        if tail:
            de = e_ref[n_full * chunk_b:, :].astype(jnp.float32) - e_mean
            dt = tau_ref[n_full * chunk_b:, :].astype(jnp.float32) - t_mean
            ess = ess + jnp.sum(de * de, axis=0, keepdims=True)
            tss = tss + jnp.sum(dt * dt, axis=0, keepdims=True)
            cov = cov + jnp.sum(de * dt, axis=0, keepdims=True)

        # Unbiased (N-1) std, matching torch.std(dim=0).
        inv_nm1 = 1.0 / (b_total - 1)
        e_std = jnp.sqrt(ess * inv_nm1)
        t_std = jnp.sqrt(tss * inv_nm1)

        # diag(c) = cov / ((std_e+eps)*(std_tau+eps)) / B.  The normalization is
        # hoisted out of the (B, tile_d) elementwise work; only a (1, tile_d)
        # divide remains, so exact division keeps parity with the torch ref.
        denom = (e_std + 1e-9) * (t_std + 1e-9)
        c_diag = (cov * inv_b) / denom
        out_ref[...] = (1.0 - c_diag) ** 2

    return kernel


def barlow_twins_loss(e, tau, lambda_param=0.0051, tile_d=None):
    """Pallas TPU implementation of BarlowTwinsLoss.forward.

    lambda_param is accepted but unused, exactly as in the reference module.
    Inputs may be f32 or bf16 (bf16 stays narrow over HBM; upcast is per-tile).
    """
    assert e.shape == tau.shape and e.ndim == 2, "expected (batch, feature_dim)"
    B, D = e.shape
    assert B >= 2, "batch_size must be >= 2 (torch.std(dim=0) is NaN for B == 1)"
    itemsize = jnp.dtype(e.dtype).itemsize

    vmem_cap = _vmem_capacity_bytes()
    input_budget = vmem_cap // 4   # double-buffered streaming input blocks
    temp_budget = vmem_cap // 8    # in-kernel f32 chunk temporaries

    # Feature (lane) axis is padded to a multiple of 128; candidate tile widths
    # are multiples of 128 that divide the padded width exactly (no extra
    # padding / HBM copy beyond lane alignment).
    d_pad = _round_up(D, _LANE)
    n_lane_blocks = d_pad // _LANE
    candidates = [m * _LANE for m in range(1, n_lane_blocks + 1)
                  if n_lane_blocks % m == 0]

    if tile_d is None:
        # Budget-derived lane-tile cap: 2 inputs x 2 pipeline buffers x B rows.
        budget_cap = input_budget // max(1, 2 * 2 * B * itemsize)
        budget_cap = max(_LANE, budget_cap // _LANE * _LANE)
        # Keep each strided-DMA row (tile_d * itemsize contiguous bytes) >= ~1 KiB.
        min_row = min(d_pad, _round_up(max(_LANE, 1024 // itemsize), _LANE))
        cap = min(4096, max(budget_cap, min_row))
        tile_d = max(c for c in candidates if c <= cap)
        # v7x megacore: keep >= 2 feature tiles when D allows so the "parallel"
        # grid axis can be split across both TensorCores (negligible cost on
        # single-TC v5e/v6e).
        if tile_d == d_pad and d_pad >= 2 * _LANE:
            smaller = [c for c in candidates if c <= d_pad // 2]
            if smaller:
                tile_d = max(smaller)
        # Safety: step down if even double-buffered inputs would eat most of VMEM.
        while tile_d > _LANE and 2 * 2 * B * tile_d * itemsize > vmem_cap // 2:
            smaller = [c for c in candidates if c < tile_d]
            if not smaller:
                break
            tile_d = max(smaller)
        # TODO(synk): for extreme batch sizes where even a 128-lane tile exceeds
        # ~half of VMEM, add a second "arbitrary" grid axis over the batch with a
        # Chan-style combine of per-block statistics instead of spilling.
    else:
        tile_d = max(_LANE, min(_round_up(tile_d, _LANE), d_pad))

    D_pad = _round_up(D, tile_d)
    if D_pad != D:
        # Zero-padded features are sliced away before the final sum, so they
        # never contribute to the loss (0 / 1e-18 == 0, no NaNs).
        e = jnp.pad(e, ((0, 0), (0, D_pad - D)))
        tau = jnp.pad(tau, ((0, 0), (0, D_pad - D)))
    num_tiles = D_pad // tile_d

    # Batch-chunk size for the in-kernel two-pass reduction.
    max_chunk = max(8, temp_budget // (8 * tile_d * 4))
    chunk_b = min(B, 512, max_chunk)
    if B >= 8:
        chunk_b = max(8, chunk_b // 8 * 8)   # sublane-aligned dynamic slices
    n_full = B // chunk_b
    tail = B - n_full * chunk_b

    # Input pipelining depth: go 3-deep only when there are many small tiles
    # (short per-step compute exposes DMA issue latency) and headroom exists.
    n_buf = 2
    if num_tiles >= 8 and 2 * 3 * B * tile_d * itemsize <= input_budget:
        n_buf = 3

    footprint = (2 * n_buf * B * tile_d * itemsize   # pipelined input blocks
                 + 8 * chunk_b * tile_d * 4          # f32 chunk temporaries
                 + 8 * tile_d * 4)                   # (1, tile_d) accums + out
    vmem_limit = min(vmem_cap * 3 // 4,
                     max(16 * 1024 * 1024, footprint + (4 << 20)))

    cost = pl.CostEstimate(
        flops=10 * B * D_pad,
        transcendentals=2 * D_pad,
        bytes_accessed=2 * B * D_pad * itemsize + 4 * D_pad)

    kernel = _make_barlow_tile_kernel(chunk_b, n_full, tail, unroll=n_full <= 8)

    per_feature_sqerr = pl.pallas_call(
        kernel,
        out_shape=jax.ShapeDtypeStruct((1, D_pad), jnp.float32),
        grid=(num_tiles,),
        in_specs=[_input_block_spec(B, tile_d, n_buf),
                  _input_block_spec(B, tile_d, n_buf)],
        # Each grid step writes its own disjoint lane-dense (1, tile_d) block,
        # so the feature axis is truly "parallel" (v7x splits it across TCs).
        out_specs=pl.BlockSpec((1, tile_d), lambda j: (0, j)),
        compiler_params=pltpu.CompilerParams(
            dimension_semantics=("parallel",),
            vmem_limit_bytes=int(vmem_limit)),
        cost_estimate=cost,
    )(e, tau)

    # Tiny O(D) reduction; negligible next to the 2*B*D HBM stream.
    return jnp.sum(per_feature_sqerr[0, :D])


def _reference(e, tau):
    e = e.astype(jnp.float32)
    tau = tau.astype(jnp.float32)
    b = e.shape[0]
    e_norm = (e - e.mean(axis=0)) / (e.std(axis=0, ddof=1) + 1e-9)
    t_norm = (tau - tau.mean(axis=0)) / (tau.std(axis=0, ddof=1) + 1e-9)
    c_diag = jnp.einsum("bd,bd->d", e_norm, t_norm,
                        precision=jax.lax.Precision.HIGHEST) / b
    return jnp.sum((1.0 - c_diag) ** 2)


if __name__ == "__main__":
    key = jax.random.PRNGKey(0)
    cases = [
        # (batch, feature_dim, forced tile_d, dtype)
        (8, 32, None, jnp.float32),      # single padded 128-lane tile
        (8, 384, 128, jnp.float32),      # forced tile: 3-tile grid
        (10, 256, None, jnp.float32),    # B not multiple of 8 -> tail chunk; >=2-tile split
        (16, 1024, 128, jnp.float32),    # 8 tiles -> deeper input pipelining path
        (8, 256, None, jnp.bfloat16),    # bf16 inputs upcast per-tile inside the kernel
    ]
    for bsz, fd, tile, dt in cases:
        key, k1, k2 = jax.random.split(key, 3)
        e = jax.random.normal(k1, (bsz, fd), dtype=jnp.float32).astype(dt)
        tau = jax.random.normal(k2, (bsz, fd), dtype=jnp.float32).astype(dt)

        loss = jax.block_until_ready(barlow_twins_loss(e, tau, tile_d=tile))
        ref = _reference(e, tau)
        assert jnp.allclose(loss, ref, rtol=1e-4, atol=1e-4), (
            bsz, fd, str(dt), float(loss), float(ref))

    print("KERNEL_OK")
</pallas_src>

<mosaic_0001>
module attributes {stable_mosaic.version = 11 : i64} {
  func.func @kernel(%arg0: i32, %arg1: memref<8x128xf32, #tpu.memory_space<vmem>>, %arg2: memref<8x128xf32, #tpu.memory_space<vmem>>, %arg3: memref<1x128xf32, #tpu.memory_space<vmem>>) attributes {dimension_semantics = [#tpu.dimension_semantics<parallel>], iteration_bounds = array<i64: 1>, scalar_prefetch = 0 : i64, scratch_operands = 0 : i64, tpu.core_type = #tpu.core_type<tc>, window_params = [{transform_indices = @transform_0, window_bounds = array<i64: 8, 128>}, {transform_indices = @transform_1, window_bounds = array<i64: 8, 128>}, {transform_indices = @transform_2, window_bounds = array<i64: 1, 128>}]} {
    %cst = arith.constant 0.000000e+00 : f32
    %0 = vector.broadcast %cst : f32 to vector<1x128xf32>
    %c0_i32 = arith.constant 0 : i32
    %c8_i32 = arith.constant 8 : i32
    %1 = arith.muli %c0_i32, %c8_i32 : i32
    %2 = tpu.assume_multiple %1, 8 : i32
    %3 = arith.index_cast %2 : i32 to index
    %c0 = arith.constant 0 : index
    %4 = vector.load %arg1[%3, %c0] : memref<8x128xf32, #tpu.memory_space<vmem>>, vector<8x128xf32>
    %5 = arith.index_cast %2 : i32 to index
    %c0_0 = arith.constant 0 : index
    %6 = vector.load %arg2[%5, %c0_0] : memref<8x128xf32, #tpu.memory_space<vmem>>, vector<8x128xf32>
    %cst_1 = arith.constant dense<0.000000e+00> : vector<128xf32>
    %7 = vector.multi_reduction <add>, %4, %cst_1 [0] : vector<8x128xf32> to vector<128xf32>
    %8 = vector.shape_cast %7 : vector<128xf32> to vector<1x128xf32>
    %9 = arith.addf %0, %8 : vector<1x128xf32>
    %cst_2 = arith.constant dense<0.000000e+00> : vector<128xf32>
    %10 = vector.multi_reduction <add>, %6, %cst_2 [0] : vector<8x128xf32> to vector<128xf32>
    %11 = vector.shape_cast %10 : vector<128xf32> to vector<1x128xf32>
    %12 = arith.addf %0, %11 : vector<1x128xf32>
    %c1_i32 = arith.constant 1 : i32
    %cst_3 = arith.constant 1.250000e-01 : f32
    %13 = vector.broadcast %cst_3 : f32 to vector<1x128xf32>
    %14 = arith.mulf %9, %13 : vector<1x128xf32>
    %cst_4 = arith.constant 1.250000e-01 : f32
    %15 = vector.broadcast %cst_4 : f32 to vector<1x128xf32>
    %16 = arith.mulf %12, %15 : vector<1x128xf32>
    %c0_i32_5 = arith.constant 0 : i32
    %c8_i32_6 = arith.constant 8 : i32
    %17 = arith.muli %c0_i32_5, %c8_i32_6 : i32
    %18 = tpu.assume_multiple %17, 8 : i32
    %19 = arith.index_cast %18 : i32 to index
    %c0_7 = arith.constant 0 : index
    %20 = vector.load %arg1[%19, %c0_7] : memref<8x128xf32, #tpu.memory_space<vmem>>, vector<8x128xf32>
    %21 = vector.broadcast %14 : vector<1x128xf32> to vector<8x128xf32>
    %22 = arith.subf %20, %21 : vector<8x128xf32>
    %23 = arith.index_cast %18 : i32 to index
    %c0_8 = arith.constant 0 : index
    %24 = vector.load %arg2[%23, %c0_8] : memref<8x128xf32, #tpu.memory_space<vmem>>, vector<8x128xf32>
    %25 = vector.broadcast %16 : vector<1x128xf32> to vector<8x128xf32>
    %26 = arith.subf %24, %25 : vector<8x128xf32>
    %27 = arith.mulf %22, %22 : vector<8x128xf32>
    %cst_9 = arith.constant dense<0.000000e+00> : vector<128xf32>
    %28 = vector.multi_reduction <add>, %27, %cst_9 [0] : vector<8x128xf32> to vector<128xf32>
    %29 = vector.shape_cast %28 : vector<128xf32> to vector<1x128xf32>
    %30 = arith.addf %0, %29 : vector<1x128xf32>
    %31 = arith.mulf %26, %26 : vector<8x128xf32>
    %cst_10 = arith.constant dense<0.000000e+00> : vector<128xf32>
    %32 = vector.multi_reduction <add>, %31, %cst_10 [0] : vector<8x128xf32> to vector<128xf32>
    %33 = vector.shape_cast %32 : vector<128xf32> to vector<1x128xf32>
    %34 = arith.addf %0, %33 : vector<1x128xf32>
    %35 = arith.mulf %22, %26 : vector<8x128xf32>
    %cst_11 = arith.constant dense<0.000000e+00> : vector<128xf32>
    %36 = vector.multi_reduction <add>, %35, %cst_11 [0] : vector<8x128xf32> to vector<128xf32>
    %37 = vector.shape_cast %36 : vector<128xf32> to vector<1x128xf32>
    %38 = arith.addf %0, %37 : vector<1x128xf32>
    %c1_i32_12 = arith.constant 1 : i32
    %cst_13 = arith.constant 0.142857149 : f32
    %39 = vector.broadcast %cst_13 : f32 to vector<1x128xf32>
    %40 = arith.mulf %30, %39 : vector<1x128xf32>
    %41 = math.sqrt %40 : vector<1x128xf32>
    %cst_14 = arith.constant 0.142857149 : f32
    %42 = vector.broadcast %cst_14 : f32 to vector<1x128xf32>
    %43 = arith.mulf %34, %42 : vector<1x128xf32>
    %44 = math.sqrt %43 : vector<1x128xf32>
    %cst_15 = arith.constant 9.99999971E-10 : f32
    %45 = vector.broadcast %cst_15 : f32 to vector<1x128xf32>
    %46 = arith.addf %41, %45 : vector<1x128xf32>
    %cst_16 = arith.constant 9.99999971E-10 : f32
    %47 = vector.broadcast %cst_16 : f32 to vector<1x128xf32>
    %48 = arith.addf %44, %47 : vector<1x128xf32>
    %49 = arith.mulf %46, %48 : vector<1x128xf32>
    %cst_17 = arith.constant 1.250000e-01 : f32
    %50 = vector.broadcast %cst_17 : f32 to vector<1x128xf32>
    %51 = arith.mulf %38, %50 : vector<1x128xf32>
    %52 = arith.divf %51, %49 : vector<1x128xf32>
    %cst_18 = arith.constant 1.000000e+00 : f32
    %53 = vector.broadcast %cst_18 : f32 to vector<1x128xf32>
    %54 = arith.subf %53, %52 : vector<1x128xf32>
    %55 = arith.mulf %54, %54 : vector<1x128xf32>
    %c0_19 = arith.constant 0 : index
    %c0_20 = arith.constant 0 : index
    %56 = vector.load %arg3[%c0_19, %c0_20] : memref<1x128xf32, #tpu.memory_space<vmem>>, vector<1x128xf32>
    tpu.vector_store %arg3[%c0_19, %c0_20], %55 {strides = array<i32>} : memref<1x128xf32, #tpu.memory_space<vmem>>, vector<1x128xf32>,
    return
  }
  func.func @transform_0(%arg0: i32) -> (i32, i32) {
    %c0_i32 = arith.constant 0 : i32
    %c0_i32_0 = arith.constant 0 : i32
    return %c0_i32, %arg0 : i32, i32
  }
  func.func @transform_1(%arg0: i32) -> (i32, i32) {
    %c0_i32 = arith.constant 0 : i32
    %c0_i32_0 = arith.constant 0 : i32
    return %c0_i32, %arg0 : i32, i32
  }
  func.func @transform_2(%arg0: i32) -> (i32, i32) {
    %c0_i32 = arith.constant 0 : i32
    %c0_i32_0 = arith.constant 0 : i32
    return %c0_i32, %arg0 : i32, i32
  }
}

</mosaic_0001>

<llo_original>
// kernel: tpu_custom_call.1
$region0: #{tpu_custom_call.1}
  #allocation0 [shape = 'u32[]', space=smem, size = 0x4, offset = 0x4, fixed_abs, tag = 'smem constant byte address 0x4 - core index']
  #allocation1 [shape = 'u32[144,128]{1,0:T(1,128)}', space=vmem, size = 0x12000, scoped, tag = 'internal scratch']
  %s0 = inlined_call_operand.hbm [shape: f32[8,128], index: 0, kind: input, shape index: {}]
  %s1 = inlined_call_operand.hbm [shape: f32[8,128], index: 1, kind: input, shape index: {}]
  %s2 = inlined_call_operand.hbm [shape: f32[1,128], index: 2, kind: output, shape index: {}]
  %s3 = sld [smem:[#allocation0]]
  $region26: #{tpu_custom_call.1} parent=0
    _
  %s5 = ssub.s32 1, %s3
  %s6 = scalar_select 0, %s5, %s3
  $region1: #{tpu_custom_call.1} parent=0
    #allocation2 [shape = 'u8[4096]{0}', space=vmem, size = 0x1000, scoped, tag = 'input window, operand 0, single buffered']
    #allocation3 [shape = 's32[1]{0}', space=sflag, size = 0x4, scoped, tag = 'scoped memory for tpu_custom_call.1']
    #allocation4 [shape = 's32[1]{0}', space=sflag, size = 0x4, scoped, tag = 'scoped memory for tpu_custom_call.1']
    #allocation5 [shape = 'u8[4096]{0}', space=vmem, size = 0x1000, scoped, tag = 'input window, operand 1, single buffered']
    #allocation6 [shape = 's32[1]{0}', space=sflag, size = 0x4, scoped, tag = 'scoped memory for tpu_custom_call.1']
    #allocation7 [shape = 'u8[512]{0}', space=vmem, size = 0x400, scoped, tag = 'output window, operand 0, single buffered']
    %7 = vsyncpa [#allocation3], 0
    %8 = vsyncpa [#allocation6], 0
    %9 = vsyncpa [#allocation4], 0
    // Predicated region
    $region2: #{tpu_custom_call.1} parent=1 // pred_check
      _
    $region3: #{tpu_custom_call.1} parent=1 // pred_check_branch
      %11 = sbr.rel (0) target = $region5
    $region4: #{tpu_custom_call.1} parent=1 // pred_region
      %s13 = ssub.s32 128, 128
      %14 = vsyncadd [#allocation3], %s13
      %s16 = sshll.u32 [#allocation2], 4
      %s17 = int_to_ptr.vmem [resolvable:$true] %s16
      %19 = dma.hbm_to_vmem [thread:$0]  %s0, 128, %s17, [#allocation3]
    $region5: #{tpu_custom_call.1} parent=1 // pred_fallthru
      _
    // Predicated region
    $region6: #{tpu_custom_call.1} parent=1 // pred_check
      _
    $region7: #{tpu_custom_call.1} parent=1 // pred_check_branch
      %21 = sbr.rel (0) target = $region9
    $region8: #{tpu_custom_call.1} parent=1 // pred_region
      %s23 = ssub.s32 128, 128
      %24 = vsyncadd [#allocation6], %s23
      %s26 = sshll.u32 [#allocation5], 4
      %s27 = int_to_ptr.vmem [resolvable:$true] %s26
      %29 = dma.hbm_to_vmem [thread:$0]  %s1, 128, %s27, [#allocation6]
    $region9: #{tpu_custom_call.1} parent=1 // pred_fallthru
      _
    // Predicated region
    $region10: #{tpu_custom_call.1} parent=1 // pred_check
      _
    $region11: #{tpu_custom_call.1} parent=1 // pred_check_branch
      %31 = sbr.rel (0) target = $region13
    $region12: #{tpu_custom_call.1} parent=1 // pred_region
      %32 = dma.done [#allocation3], 128
    $region13: #{tpu_custom_call.1} parent=1 // pred_fallthru
      _
    // Predicated region
    $region14: #{tpu_custom_call.1} parent=1 // pred_check
      _
    $region15: #{tpu_custom_call.1} parent=1 // pred_check_branch
      %34 = sbr.rel (0) target = $region17
    $region16: #{tpu_custom_call.1} parent=1 // pred_region
      %35 = dma.done [#allocation6], 128
    $region17: #{tpu_custom_call.1} parent=1 // pred_fallthru
      _
    %v36 = vld [vmem:[#allocation2] sm:$0xff]
    %v37 = vld [vmem:[#allocation5] sm:$0xff]
    %v38 = vrot.slane %v36, 4
    %v39 = vadd.f32 %v36, %v38
    %v40 = vrot.slane %v39, 2
    %v41 = vadd.f32 %v39, %v40
    %v42 = vrot.slane %v41, 1
    %v43 = vadd.f32 %v41, %v42
    %v44 = vadd.f32 %v43, 0.0
    %v45 = vrot.slane %v37, 4
    %v46 = vadd.f32 %v37, %v45
    %v47 = vrot.slane %v46, 2
    %v48 = vadd.f32 %v46, %v47
    %v49 = vrot.slane %v48, 1
    %v50 = vadd.f32 %v48, %v49
    %v51 = vadd.f32 %v50, 0.0
    %v52 = vmul.f32 %v44, 0.125
    %v53 = vmul.f32 %v51, 0.125
    %v54 = vsub.f32 %v36, %v52
    %v55 = vsub.f32 %v37, %v53
    %v56 = vmul.f32 %v54, %v54
    %v57 = vrot.slane %v56, 4
    %v58 = vadd.f32 %v56, %v57
    %v59 = vrot.slane %v58, 2
    %v60 = vadd.f32 %v58, %v59
    %v61 = vrot.slane %v60, 1
    %v62 = vadd.f32 %v60, %v61
    %v63 = vadd.f32 %v62, 0.0
    %v64 = vmul.f32 %v55, %v55
    %v65 = vrot.slane %v64, 4
    %v66 = vadd.f32 %v64, %v65
    %v67 = vrot.slane %v66, 2
    %v68 = vadd.f32 %v66, %v67
    %v69 = vrot.slane %v68, 1
    %v70 = vadd.f32 %v68, %v69
    %v71 = vadd.f32 %v70, 0.0
    %v72 = vmul.f32 %v54, %v55
    %v73 = vrot.slane %v72, 4
    %v74 = vadd.f32 %v72, %v73
    %v75 = vrot.slane %v74, 2
    %v76 = vadd.f32 %v74, %v75
    %v77 = vrot.slane %v76, 1
    %v78 = vadd.f32 %v76, %v77
    %v79 = vadd.f32 %v78, 0.0
    %v80 = vmul.f32 %v63, 0.14285715
    %v81 = vrsqrt.pop %v80
    %v82 = vmul.f32 %v80, %v81
    %vm83 = vcmp.eq.f32.partialorder %v80, inf
    %v84 = vsel %vm83, %v80, %v82
    %vm85 = vcmp.eq.f32.partialorder %v80, 0.0
    %v86 = vand.u32 %v80, 2147483648
    %v87 = vsel %vm85, %v86, %v84
    %v88 = vmul.f32 %v71, 0.14285715
    %v89 = vrsqrt.pop %v88
    %v90 = vmul.f32 %v88, %v89
    %vm91 = vcmp.eq.f32.partialorder %v88, inf
    %v92 = vsel %vm91, %v88, %v90
    %vm93 = vcmp.eq.f32.partialorder %v88, 0.0
    %v94 = vand.u32 %v88, 2147483648
    %v95 = vsel %vm93, %v94, %v92
    %v96 = vadd.f32 %v87, 1e-09
    %v97 = vadd.f32 %v95, 1e-09
    %v98 = vmul.f32 %v96, %v97
    %v99 = vmul.f32 %v79, 0.125
    %v100 = vrcp.pop %v98
    %v101 = vmul.f32 %v99, %v100
    %v102 = vsub.f32 1.0, %v101
    %v103 = vmul.f32 %v102, %v102
    %104 = vst [vmem:[#allocation7] sm:$0x1] %v103
    // Predicated region
    $region18: #{tpu_custom_call.1} parent=1 // pred_check
      _
    $region19: #{tpu_custom_call.1} parent=1 // pred_check_branch
      %106 = sbr.rel (0) target = $region21
    $region20: #{tpu_custom_call.1} parent=1 // pred_region
      %s108 = ssub.s32 16, 16
      %109 = vsyncadd [#allocation4], %s108
      %s111 = sshll.u32 [#allocation7], 4
      %s112 = int_to_ptr.vmem [resolvable:$true] %s111
      %114 = dma.vmem_to_hbm [thread:$0]  %s112, 16, %s2, [#allocation4]
    $region21: #{tpu_custom_call.1} parent=1 // pred_fallthru
      _
    // Predicated region
    $region22: #{tpu_custom_call.1} parent=1 // pred_check
      _
    $region23: #{tpu_custom_call.1} parent=1 // pred_check_branch
      %116 = sbr.rel (0) target = $region25
    $region24: #{tpu_custom_call.1} parent=1 // pred_region
      %117 = dma.done [#allocation4], 16
    $region25: #{tpu_custom_call.1} parent=1 // pred_fallthru
      _
    %118 = vsyncpa [#allocation3], 1
    %119 = vsyncpa [#allocation6], 1
    %120 = vsyncpa [#allocation4], 1

</llo_original>
